<compile_context>
chip_gen: v7x
topology: tpu7x:2x2x1
jax: 0.10.0
libtpu: 0.0.40
codegen_flags: <defaults>
</compile_context>

<pallas_src>
import jax
import jax.numpy as jnp
import numpy as np
from jax import lax
from jax.experimental import pallas as pl
from jax.experimental.pallas import tpu as pltpu

EPS = 1e-5


def _make_kernel(N, H2, W2, Cin, Cmid, Cout, pad):
    M = N * H2 * W2

    def kernel(xw_ref, mask_ref, w1_ref, g1_ref, b1_ref, w2_ref, g2_ref, b2_ref,
               o_ref, pad1_ref, pat1_ref, pad2_ref, pat2_ref):
        # xw_ref  : (4*Cin, M) f32 -- 2x2 pool-window element j at rows [j*Cin:(j+1)*Cin]
        # mask_ref: (9, M)    f32 -- per-tap 'same'-padding validity mask
        # w1_ref  : (Cmid, 9*Cin)  bf16, column = (ky*3+kx)*Cin + ci
        # w2_ref  : (Cout, 9*Cmid) bf16
        # g*/b*   : (C, 1)    f32
        # o_ref   : (Cout, M) f32 -- lane-dense output slab
        # pad*_ref: (C, M+2*pad)   flat zero-padded activation row (VMEM scratch)
        # pat*_ref: (9*C, M)       im2col patch matrix (VMEM scratch)

        # ---- MaxPool2d(2): elementwise max of the 4 lane-dense window slabs ------
        xw = xw_ref[...]
        pooled = jnp.maximum(
            jnp.maximum(xw[0 * Cin:1 * Cin], xw[1 * Cin:2 * Cin]),
            jnp.maximum(xw[2 * Cin:3 * Cin], xw[3 * Cin:4 * Cin]))      # (Cin, M)

        def conv3x3(h, c_in, pad_ref, pat_ref, w_ref):
            # Flat zero-padded activation: one dense zero fill + one dense store.
            pad_ref[...] = jnp.zeros(pad_ref.shape, jnp.float32)
            pad_ref[:, pad:pad + M] = h
            hp = pad_ref[...]                                   # (c_in, M + 2*pad)
            # im2col: 9 statically shifted, boundary-masked copies; each store is a
            # full-128-lane block at a static sublane offset (no narrow strips).
            for ky in range(3):
                for kx in range(3):
                    t = ky * 3 + kx
                    off = pad + (ky - 1) * W2 + (kx - 1)
                    pat_ref[t * c_in:(t + 1) * c_in, :] = (
                        hp[:, off:off + M] * mask_ref[t:t + 1, :])
            # Single MXU GEMM per conv: K = 9*c_in, lane-dense (c_out, M) result,
            # bf16 operands with f32 accumulation.
            return jnp.dot(w_ref[...],
                           pat_ref[...].astype(jnp.bfloat16),
                           preferred_element_type=jnp.float32)

        def bn_relu(y, g_ref, b_ref):
            # PyTorch training-mode BatchNorm: batch stats over (N, H, W) = lane axis,
            # biased variance; elementwise math kept in f32.
            mean = jnp.mean(y, axis=1, keepdims=True)
            var = jnp.mean((y - mean) ** 2, axis=1, keepdims=True)
            y = (y - mean) * lax.rsqrt(var + EPS) * g_ref[...] + b_ref[...]
            return jnp.maximum(y, 0.0)

        h1 = bn_relu(conv3x3(pooled, Cin, pad1_ref, pat1_ref, w1_ref), g1_ref, b1_ref)
        h2 = bn_relu(conv3x3(h1, Cmid, pad2_ref, pat2_ref, w2_ref), g2_ref, b2_ref)
        o_ref[...] = h2

    return kernel


def _full_spec(shape):
    n = len(shape)
    return pl.BlockSpec(shape, lambda i, _n=n: (0,) * _n)


@jax.jit
def down_block_pallas(x_nchw, w1, g1, b1, w2, g2, b2):
    """x_nchw: (N, Cin, H, W) float32. Conv weights in PyTorch OIHW layout."""
    N, Cin, H, W = x_nchw.shape
    assert H % 2 == 0 and W % 2 == 0, "MaxPool2d(2) requires even H and W"
    H2, W2 = H // 2, W // 2
    Cmid = w1.shape[0]
    Cout = w2.shape[0]
    M = N * H2 * W2
    pad = W2 + 1                      # max flat shift of a 3x3 'same' conv tap

    # Single input layout pass: expose the 2x2 pool window on the leading axis and
    # flatten (N, H2, W2) onto the lane axis.
    x6 = x_nchw.reshape(N, Cin, H2, 2, W2, 2)
    x_win = jnp.transpose(x6, (3, 5, 1, 0, 2, 4)).reshape(4 * Cin, M)

    # Per-tap 'same'-padding validity masks (trace-time constants).
    mi = np.arange(M)
    xs = mi % W2
    ys = (mi // W2) % H2
    masks_np = np.zeros((9, M), np.float32)
    for ky in range(3):
        for kx in range(3):
            dy, dx = ky - 1, kx - 1
            ok = ((xs + dx >= 0) & (xs + dx < W2) &
                  (ys + dy >= 0) & (ys + dy < H2))
            masks_np[ky * 3 + kx] = ok.astype(np.float32)
    masks = jnp.asarray(masks_np)

    # OIHW -> (Cout, 9*Cin) im2col weights, column = (ky*3+kx)*Cin + ci; bf16.
    w1_r = jnp.transpose(w1, (0, 2, 3, 1)).reshape(Cmid, 9 * Cin).astype(jnp.bfloat16)
    w2_r = jnp.transpose(w2, (0, 2, 3, 1)).reshape(Cout, 9 * Cmid).astype(jnp.bfloat16)
    g1_k = g1.reshape(Cmid, 1)
    b1_k = b1.reshape(Cmid, 1)
    g2_k = g2.reshape(Cout, 1)
    b2_k = b2.reshape(Cout, 1)

    inputs = (x_win, masks, w1_r, g1_k, b1_k, w2_r, g2_k, b2_k)

    out_flat = pl.pallas_call(
        _make_kernel(N, H2, W2, Cin, Cmid, Cout, pad),
        out_shape=jax.ShapeDtypeStruct((Cout, M), jnp.float32),
        grid=(1,),
        in_specs=[_full_spec(a.shape) for a in inputs],
        out_specs=_full_spec((Cout, M)),
        scratch_shapes=[
            pltpu.VMEM((Cin, M + 2 * pad), jnp.float32),
            pltpu.VMEM((9 * Cin, M), jnp.float32),
            pltpu.VMEM((Cmid, M + 2 * pad), jnp.float32),
            pltpu.VMEM((9 * Cmid, M), jnp.float32),
        ],
        compiler_params=pltpu.CompilerParams(
            dimension_semantics=("arbitrary",)),
    )(*inputs)

    # Lane-dense (Cout, N*H2*W2) slab -> NCHW (cheap final layout pass).
    return jnp.transpose(out_flat.reshape(Cout, N, H2, W2), (1, 0, 2, 3))


def down_block_ref(x, w1, g1, b1, w2, g2, b2):
    """Pure-JAX f32 reference matching PyTorch training-mode forward."""
    N, C, H, W = x.shape
    xp = x.reshape(N, C, H // 2, 2, W // 2, 2).max(axis=(3, 5))

    def conv_bn_relu(h, w, g, b):
        y = lax.conv_general_dilated(
            h, w, window_strides=(1, 1), padding="SAME",
            dimension_numbers=("NCHW", "OIHW", "NCHW"))
        mean = jnp.mean(y, axis=(0, 2, 3), keepdims=True)
        var = jnp.mean((y - mean) ** 2, axis=(0, 2, 3), keepdims=True)
        y = (y - mean) * lax.rsqrt(var + EPS) * g.reshape(1, -1, 1, 1) \
            + b.reshape(1, -1, 1, 1)
        return jnp.maximum(y, 0.0)

    h = conv_bn_relu(xp, w1, g1, b1)
    return conv_bn_relu(h, w2, g2, b2)


if __name__ == "__main__":
    # Small shapes: N=2, in_channels=4, out_channels=8, spatial=16x16.
    N, Cin, Cout, H, W = 2, 4, 8, 16, 16
    Cmid = Cout  # DoubleConv default: mid_channels = out_channels

    key = jax.random.PRNGKey(0)
    k_x, k_w1, k_w2, k_g1, k_b1, k_g2, k_b2 = jax.random.split(key, 7)

    x = jax.random.normal(k_x, (N, Cin, H, W), jnp.float32)
    w1 = 0.1 * jax.random.normal(k_w1, (Cmid, Cin, 3, 3), jnp.float32)
    w2 = 0.1 * jax.random.normal(k_w2, (Cout, Cmid, 3, 3), jnp.float32)
    g1 = 1.0 + 0.1 * jax.random.normal(k_g1, (Cmid,), jnp.float32)
    b1 = 0.1 * jax.random.normal(k_b1, (Cmid,), jnp.float32)
    g2 = 1.0 + 0.1 * jax.random.normal(k_g2, (Cout,), jnp.float32)
    b2 = 0.1 * jax.random.normal(k_b2, (Cout,), jnp.float32)

    out = down_block_pallas(x, w1, g1, b1, w2, g2, b2)
    out = jax.block_until_ready(out)

    ref = down_block_ref(x, w1, g1, b1, w2, g2, b2)
    # bf16 MXU operands (per perf review) -> agreement with the f32 reference is at
    # the ~1e-2 level after two conv+BN stages.
    np.testing.assert_allclose(np.asarray(out), np.asarray(ref),
                               rtol=2e-2, atol=2e-2)

    print("KERNEL_OK")
</pallas_src>

<mosaic_0001>
module attributes {stable_mosaic.version = 11 : i64} {
  func.func @kernel(%arg0: i32, %arg1: memref<16x128xf32, #tpu.memory_space<vmem>>, %arg2: memref<9x128xf32, #tpu.memory_space<vmem>>, %arg3: memref<8x36xbf16, #tpu.memory_space<vmem>>, %arg4: memref<8x1xf32, #tpu.memory_space<vmem>>, %arg5: memref<8x1xf32, #tpu.memory_space<vmem>>, %arg6: memref<8x72xbf16, #tpu.memory_space<vmem>>, %arg7: memref<8x1xf32, #tpu.memory_space<vmem>>, %arg8: memref<8x1xf32, #tpu.memory_space<vmem>>, %arg9: memref<8x128xf32, #tpu.memory_space<vmem>>, %arg10: memref<4x146xf32, #tpu.memory_space<vmem>>, %arg11: memref<36x128xf32, #tpu.memory_space<vmem>>, %arg12: memref<8x146xf32, #tpu.memory_space<vmem>>, %arg13: memref<72x128xf32, #tpu.memory_space<vmem>>) attributes {dimension_semantics = [#tpu.dimension_semantics<arbitrary>], iteration_bounds = array<i64: 1>, scalar_prefetch = 0 : i64, scratch_operands = 4 : i64, tpu.core_type = #tpu.core_type<tc>, window_params = [{pipeline_mode = #tpu.pipeline_mode<synchronous>, transform_indices = @transform_0, window_bounds = array<i64: 16, 128>}, {pipeline_mode = #tpu.pipeline_mode<synchronous>, transform_indices = @transform_1, window_bounds = array<i64: 9, 128>}, {pipeline_mode = #tpu.pipeline_mode<synchronous>, transform_indices = @transform_2, window_bounds = array<i64: 8, 36>}, {pipeline_mode = #tpu.pipeline_mode<synchronous>, transform_indices = @transform_3, window_bounds = array<i64: 8, 1>}, {pipeline_mode = #tpu.pipeline_mode<synchronous>, transform_indices = @transform_4, window_bounds = array<i64: 8, 1>}, {pipeline_mode = #tpu.pipeline_mode<synchronous>, transform_indices = @transform_5, window_bounds = array<i64: 8, 72>}, {pipeline_mode = #tpu.pipeline_mode<synchronous>, transform_indices = @transform_6, window_bounds = array<i64: 8, 1>}, {pipeline_mode = #tpu.pipeline_mode<synchronous>, transform_indices = @transform_7, window_bounds = array<i64: 8, 1>}, {pipeline_mode = #tpu.pipeline_mode<synchronous>, transform_indices = @transform_8, window_bounds = array<i64: 8, 128>}]} {
    %c0 = arith.constant 0 : index
    %c0_0 = arith.constant 0 : index
    %0 = vector.load %arg1[%c0, %c0_0] : memref<16x128xf32, #tpu.memory_space<vmem>>, vector<16x128xf32>
    %1 = vector.extract_strided_slice %0 {offsets = [0, 0], sizes = [4, 128], strides = [1, 1]} : vector<16x128xf32> to vector<4x128xf32>
    %2 = vector.extract_strided_slice %0 {offsets = [4, 0], sizes = [4, 128], strides = [1, 1]} : vector<16x128xf32> to vector<4x128xf32>
    %3 = arith.maximumf %1, %2 : vector<4x128xf32>
    %4 = vector.extract_strided_slice %0 {offsets = [8, 0], sizes = [4, 128], strides = [1, 1]} : vector<16x128xf32> to vector<4x128xf32>
    %5 = vector.extract_strided_slice %0 {offsets = [12, 0], sizes = [4, 128], strides = [1, 1]} : vector<16x128xf32> to vector<4x128xf32>
    %6 = arith.maximumf %4, %5 : vector<4x128xf32>
    %7 = arith.maximumf %3, %6 : vector<4x128xf32>
    %cst = arith.constant 0.000000e+00 : f32
    %8 = vector.broadcast %cst : f32 to vector<4x146xf32>
    %c0_1 = arith.constant 0 : index
    %c0_2 = arith.constant 0 : index
    %9 = vector.load %arg10[%c0_1, %c0_2] : memref<4x146xf32, #tpu.memory_space<vmem>>, vector<4x146xf32>
    tpu.vector_store %arg10[%c0_1, %c0_2], %8 {strides = array<i32>} : memref<4x146xf32, #tpu.memory_space<vmem>>, vector<4x146xf32>,
    %c0_3 = arith.constant 0 : index
    %c9 = arith.constant 9 : index
    %10 = vector.load %arg10[%c0_3, %c9] : memref<4x146xf32, #tpu.memory_space<vmem>>, vector<4x128xf32>
    tpu.vector_store %arg10[%c0_3, %c9], %7 {strides = array<i32>} : memref<4x146xf32, #tpu.memory_space<vmem>>, vector<4x128xf32>,
    %c0_4 = arith.constant 0 : index
    %c0_5 = arith.constant 0 : index
    %11 = vector.load %arg10[%c0_4, %c0_5] : memref<4x146xf32, #tpu.memory_space<vmem>>, vector<4x146xf32>
    %12 = vector.extract_strided_slice %11 {offsets = [0, 0], sizes = [4, 128], strides = [1, 1]} : vector<4x146xf32> to vector<4x128xf32>
    %c0_6 = arith.constant 0 : index
    %c0_7 = arith.constant 0 : index
    %13 = vector.load %arg2[%c0_6, %c0_7] : memref<9x128xf32, #tpu.memory_space<vmem>>, vector<1x128xf32>
    %14 = vector.broadcast %13 : vector<1x128xf32> to vector<4x128xf32>
    %15 = arith.mulf %12, %14 : vector<4x128xf32>
    %c0_8 = arith.constant 0 : index
    %c0_9 = arith.constant 0 : index
    %16 = vector.load %arg11[%c0_8, %c0_9] : memref<36x128xf32, #tpu.memory_space<vmem>>, vector<4x128xf32>
    tpu.vector_store %arg11[%c0_8, %c0_9], %15 {strides = array<i32>} : memref<36x128xf32, #tpu.memory_space<vmem>>, vector<4x128xf32>,
    %17 = vector.extract_strided_slice %11 {offsets = [0, 1], sizes = [4, 128], strides = [1, 1]} : vector<4x146xf32> to vector<4x128xf32>
    %c1 = arith.constant 1 : index
    %c0_10 = arith.constant 0 : index
    %18 = vector.load %arg2[%c1, %c0_10] : memref<9x128xf32, #tpu.memory_space<vmem>>, vector<1x128xf32>
    %19 = vector.broadcast %18 : vector<1x128xf32> to vector<4x128xf32>
    %20 = arith.mulf %17, %19 : vector<4x128xf32>
    %c4 = arith.constant 4 : index
    %c0_11 = arith.constant 0 : index
    %21 = vector.load %arg11[%c4, %c0_11] : memref<36x128xf32, #tpu.memory_space<vmem>>, vector<4x128xf32>
    tpu.vector_store %arg11[%c4, %c0_11], %20 {strides = array<i32>} : memref<36x128xf32, #tpu.memory_space<vmem>>, vector<4x128xf32>,
    %22 = vector.extract_strided_slice %11 {offsets = [0, 2], sizes = [4, 128], strides = [1, 1]} : vector<4x146xf32> to vector<4x128xf32>
    %c2 = arith.constant 2 : index
    %c0_12 = arith.constant 0 : index
    %23 = vector.load %arg2[%c2, %c0_12] : memref<9x128xf32, #tpu.memory_space<vmem>>, vector<1x128xf32>
    %24 = vector.broadcast %23 : vector<1x128xf32> to vector<4x128xf32>
    %25 = arith.mulf %22, %24 : vector<4x128xf32>
    %c8 = arith.constant 8 : index
    %c0_13 = arith.constant 0 : index
    %26 = vector.load %arg11[%c8, %c0_13] : memref<36x128xf32, #tpu.memory_space<vmem>>, vector<4x128xf32>
    tpu.vector_store %arg11[%c8, %c0_13], %25 {strides = array<i32>} : memref<36x128xf32, #tpu.memory_space<vmem>>, vector<4x128xf32>,
    %27 = vector.extract_strided_slice %11 {offsets = [0, 8], sizes = [4, 128], strides = [1, 1]} : vector<4x146xf32> to vector<4x128xf32>
    %c3 = arith.constant 3 : index
    %c0_14 = arith.constant 0 : index
    %28 = vector.load %arg2[%c3, %c0_14] : memref<9x128xf32, #tpu.memory_space<vmem>>, vector<1x128xf32>
    %29 = vector.broadcast %28 : vector<1x128xf32> to vector<4x128xf32>
    %30 = arith.mulf %27, %29 : vector<4x128xf32>
    %c12 = arith.constant 12 : index
    %c0_15 = arith.constant 0 : index
    %31 = vector.load %arg11[%c12, %c0_15] : memref<36x128xf32, #tpu.memory_space<vmem>>, vector<4x128xf32>
    tpu.vector_store %arg11[%c12, %c0_15], %30 {strides = array<i32>} : memref<36x128xf32, #tpu.memory_space<vmem>>, vector<4x128xf32>,
    %32 = vector.extract_strided_slice %11 {offsets = [0, 9], sizes = [4, 128], strides = [1, 1]} : vector<4x146xf32> to vector<4x128xf32>
    %c4_16 = arith.constant 4 : index
    %c0_17 = arith.constant 0 : index
    %33 = vector.load %arg2[%c4_16, %c0_17] : memref<9x128xf32, #tpu.memory_space<vmem>>, vector<1x128xf32>
    %34 = vector.broadcast %33 : vector<1x128xf32> to vector<4x128xf32>
    %35 = arith.mulf %32, %34 : vector<4x128xf32>
    %c16 = arith.constant 16 : index
    %c0_18 = arith.constant 0 : index
    %36 = vector.load %arg11[%c16, %c0_18] : memref<36x128xf32, #tpu.memory_space<vmem>>, vector<4x128xf32>
    tpu.vector_store %arg11[%c16, %c0_18], %35 {strides = array<i32>} : memref<36x128xf32, #tpu.memory_space<vmem>>, vector<4x128xf32>,
    %37 = vector.extract_strided_slice %11 {offsets = [0, 10], sizes = [4, 128], strides = [1, 1]} : vector<4x146xf32> to vector<4x128xf32>
    %c5 = arith.constant 5 : index
    %c0_19 = arith.constant 0 : index
    %38 = vector.load %arg2[%c5, %c0_19] : memref<9x128xf32, #tpu.memory_space<vmem>>, vector<1x128xf32>
    %39 = vector.broadcast %38 : vector<1x128xf32> to vector<4x128xf32>
    %40 = arith.mulf %37, %39 : vector<4x128xf32>
    %c20 = arith.constant 20 : index
    %c0_20 = arith.constant 0 : index
    %41 = vector.load %arg11[%c20, %c0_20] : memref<36x128xf32, #tpu.memory_space<vmem>>, vector<4x128xf32>
    tpu.vector_store %arg11[%c20, %c0_20], %40 {strides = array<i32>} : memref<36x128xf32, #tpu.memory_space<vmem>>, vector<4x128xf32>,
    %42 = vector.extract_strided_slice %11 {offsets = [0, 16], sizes = [4, 128], strides = [1, 1]} : vector<4x146xf32> to vector<4x128xf32>
    %c6 = arith.constant 6 : index
    %c0_21 = arith.constant 0 : index
    %43 = vector.load %arg2[%c6, %c0_21] : memref<9x128xf32, #tpu.memory_space<vmem>>, vector<1x128xf32>
    %44 = vector.broadcast %43 : vector<1x128xf32> to vector<4x128xf32>
    %45 = arith.mulf %42, %44 : vector<4x128xf32>
    %c24 = arith.constant 24 : index
    %c0_22 = arith.constant 0 : index
    %46 = vector.load %arg11[%c24, %c0_22] : memref<36x128xf32, #tpu.memory_space<vmem>>, vector<4x128xf32>
    tpu.vector_store %arg11[%c24, %c0_22], %45 {strides = array<i32>} : memref<36x128xf32, #tpu.memory_space<vmem>>, vector<4x128xf32>,
    %47 = vector.extract_strided_slice %11 {offsets = [0, 17], sizes = [4, 128], strides = [1, 1]} : vector<4x146xf32> to vector<4x128xf32>
    %c7 = arith.constant 7 : index
    %c0_23 = arith.constant 0 : index
    %48 = vector.load %arg2[%c7, %c0_23] : memref<9x128xf32, #tpu.memory_space<vmem>>, vector<1x128xf32>
    %49 = vector.broadcast %48 : vector<1x128xf32> to vector<4x128xf32>
    %50 = arith.mulf %47, %49 : vector<4x128xf32>
    %c28 = arith.constant 28 : index
    %c0_24 = arith.constant 0 : index
    %51 = vector.load %arg11[%c28, %c0_24] : memref<36x128xf32, #tpu.memory_space<vmem>>, vector<4x128xf32>
    tpu.vector_store %arg11[%c28, %c0_24], %50 {strides = array<i32>} : memref<36x128xf32, #tpu.memory_space<vmem>>, vector<4x128xf32>,
    %52 = vector.extract_strided_slice %11 {offsets = [0, 18], sizes = [4, 128], strides = [1, 1]} : vector<4x146xf32> to vector<4x128xf32>
    %c8_25 = arith.constant 8 : index
    %c0_26 = arith.constant 0 : index
    %53 = vector.load %arg2[%c8_25, %c0_26] : memref<9x128xf32, #tpu.memory_space<vmem>>, vector<1x128xf32>
    %54 = vector.broadcast %53 : vector<1x128xf32> to vector<4x128xf32>
    %55 = arith.mulf %52, %54 : vector<4x128xf32>
    %c32 = arith.constant 32 : index
    %c0_27 = arith.constant 0 : index
    %56 = vector.load %arg11[%c32, %c0_27] : memref<36x128xf32, #tpu.memory_space<vmem>>, vector<4x128xf32>
    tpu.vector_store %arg11[%c32, %c0_27], %55 {strides = array<i32>} : memref<36x128xf32, #tpu.memory_space<vmem>>, vector<4x128xf32>,
    %c0_28 = arith.constant 0 : index
    %c0_29 = arith.constant 0 : index
    %57 = vector.load %arg3[%c0_28, %c0_29] : memref<8x36xbf16, #tpu.memory_space<vmem>>, vector<8x36xbf16>
    %c0_30 = arith.constant 0 : index
    %c0_31 = arith.constant 0 : index
    %58 = vector.load %arg11[%c0_30, %c0_31] : memref<36x128xf32, #tpu.memory_space<vmem>>, vector<36x128xf32>
    %59 = arith.truncf %58 : vector<36x128xf32> to vector<36x128xbf16>
    %cst_32 = arith.constant dense<0.000000e+00> : vector<8x128xf32>
    %60 = tpu.matmul %57, %59, %cst_32 {dimension_numbers = #tpu.dot_dimension_numbers<[1], [0], [0], [1], [0, 0, 1, 1], [], []>} : vector<8x36xbf16>, vector<36x128xbf16>, vector<8x128xf32> -> vector<8x128xf32>
    %cst_33 = arith.constant dense<0.000000e+00> : vector<8xf32>
    %61 = vector.multi_reduction <add>, %60, %cst_33 [1] : vector<8x128xf32> to vector<8xf32>
    %62 = vector.shape_cast %61 : vector<8xf32> to vector<8x1xf32>
    %cst_34 = arith.constant 1.280000e+02 : f32
    %63 = vector.broadcast %cst_34 : f32 to vector<8x1xf32>
    %64 = arith.divf %62, %63 : vector<8x1xf32>
    %65 = vector.broadcast %64 : vector<8x1xf32> to vector<8x128xf32>
    %66 = arith.subf %60, %65 : vector<8x128xf32>
    %67 = arith.mulf %66, %66 : vector<8x128xf32>
    %cst_35 = arith.constant dense<0.000000e+00> : vector<8xf32>
    %68 = vector.multi_reduction <add>, %67, %cst_35 [1] : vector<8x128xf32> to vector<8xf32>
    %69 = vector.shape_cast %68 : vector<8xf32> to vector<8x1xf32>
    %cst_36 = arith.constant 1.280000e+02 : f32
    %70 = vector.broadcast %cst_36 : f32 to vector<8x1xf32>
    %71 = arith.divf %69, %70 : vector<8x1xf32>
    %72 = vector.broadcast %64 : vector<8x1xf32> to vector<8x128xf32>
    %73 = arith.subf %60, %72 : vector<8x128xf32>
    %cst_37 = arith.constant 9.99999974E-6 : f32
    %74 = vector.broadcast %cst_37 : f32 to vector<8x1xf32>
    %75 = arith.addf %71, %74 : vector<8x1xf32>
    %76 = math.rsqrt %75 : vector<8x1xf32>
    %77 = vector.broadcast %76 : vector<8x1xf32> to vector<8x128xf32>
    %78 = arith.mulf %73, %77 : vector<8x128xf32>
    %c0_38 = arith.constant 0 : index
    %c0_39 = arith.constant 0 : index
    %79 = vector.load %arg4[%c0_38, %c0_39] : memref<8x1xf32, #tpu.memory_space<vmem>>, vector<8x1xf32>
    %80 = vector.broadcast %79 : vector<8x1xf32> to vector<8x128xf32>
    %81 = arith.mulf %78, %80 : vector<8x128xf32>
    %c0_40 = arith.constant 0 : index
    %c0_41 = arith.constant 0 : index
    %82 = vector.load %arg5[%c0_40, %c0_41] : memref<8x1xf32, #tpu.memory_space<vmem>>, vector<8x1xf32>
    %83 = vector.broadcast %82 : vector<8x1xf32> to vector<8x128xf32>
    %84 = arith.addf %81, %83 : vector<8x128xf32>
    %cst_42 = arith.constant 0.000000e+00 : f32
    %85 = vector.broadcast %cst_42 : f32 to vector<8x128xf32>
    %86 = arith.maximumf %84, %85 : vector<8x128xf32>
    %cst_43 = arith.constant 0.000000e+00 : f32
    %87 = vector.broadcast %cst_43 : f32 to vector<8x146xf32>
    %c0_44 = arith.constant 0 : index
    %c0_45 = arith.constant 0 : index
    %88 = vector.load %arg12[%c0_44, %c0_45] : memref<8x146xf32, #tpu.memory_space<vmem>>, vector<8x146xf32>
    tpu.vector_store %arg12[%c0_44, %c0_45], %87 {strides = array<i32>} : memref<8x146xf32, #tpu.memory_space<vmem>>, vector<8x146xf32>,
    %c0_46 = arith.constant 0 : index
    %c9_47 = arith.constant 9 : index
    %89 = vector.load %arg12[%c0_46, %c9_47] : memref<8x146xf32, #tpu.memory_space<vmem>>, vector<8x128xf32>
    tpu.vector_store %arg12[%c0_46, %c9_47], %86 {strides = array<i32>} : memref<8x146xf32, #tpu.memory_space<vmem>>, vector<8x128xf32>,
    %c0_48 = arith.constant 0 : index
    %c0_49 = arith.constant 0 : index
    %90 = vector.load %arg12[%c0_48, %c0_49] : memref<8x146xf32, #tpu.memory_space<vmem>>, vector<8x146xf32>
    %91 = vector.extract_strided_slice %90 {offsets = [0, 0], sizes = [8, 128], strides = [1, 1]} : vector<8x146xf32> to vector<8x128xf32>
    %c0_50 = arith.constant 0 : index
    %c0_51 = arith.constant 0 : index
    %92 = vector.load %arg2[%c0_50, %c0_51] : memref<9x128xf32, #tpu.memory_space<vmem>>, vector<1x128xf32>
    %93 = vector.broadcast %92 : vector<1x128xf32> to vector<8x128xf32>
    %94 = arith.mulf %91, %93 : vector<8x128xf32>
    %c0_52 = arith.constant 0 : index
    %c0_53 = arith.constant 0 : index
    %95 = vector.load %arg13[%c0_52, %c0_53] : memref<72x128xf32, #tpu.memory_space<vmem>>, vector<8x128xf32>
    tpu.vector_store %arg13[%c0_52, %c0_53], %94 {strides = array<i32>} : memref<72x128xf32, #tpu.memory_space<vmem>>, vector<8x128xf32>,
    %96 = vector.extract_strided_slice %90 {offsets = [0, 1], sizes = [8, 128], strides = [1, 1]} : vector<8x146xf32> to vector<8x128xf32>
    %c1_54 = arith.constant 1 : index
    %c0_55 = arith.constant 0 : index
    %97 = vector.load %arg2[%c1_54, %c0_55] : memref<9x128xf32, #tpu.memory_space<vmem>>, vector<1x128xf32>
    %98 = vector.broadcast %97 : vector<1x128xf32> to vector<8x128xf32>
    %99 = arith.mulf %96, %98 : vector<8x128xf32>
    %c8_56 = arith.constant 8 : index
    %c0_57 = arith.constant 0 : index
    %100 = vector.load %arg13[%c8_56, %c0_57] : memref<72x128xf32, #tpu.memory_space<vmem>>, vector<8x128xf32>
    tpu.vector_store %arg13[%c8_56, %c0_57], %99 {strides = array<i32>} : memref<72x128xf32, #tpu.memory_space<vmem>>, vector<8x128xf32>,
    %101 = vector.extract_strided_slice %90 {offsets = [0, 2], sizes = [8, 128], strides = [1, 1]} : vector<8x146xf32> to vector<8x128xf32>
    %c2_58 = arith.constant 2 : index
    %c0_59 = arith.constant 0 : index
    %102 = vector.load %arg2[%c2_58, %c0_59] : memref<9x128xf32, #tpu.memory_space<vmem>>, vector<1x128xf32>
    %103 = vector.broadcast %102 : vector<1x128xf32> to vector<8x128xf32>
    %104 = arith.mulf %101, %103 : vector<8x128xf32>
    %c16_60 = arith.constant 16 : index
    %c0_61 = arith.constant 0 : index
    %105 = vector.load %arg13[%c16_60, %c0_61] : memref<72x128xf32, #tpu.memory_space<vmem>>, vector<8x128xf32>
    tpu.vector_store %arg13[%c16_60, %c0_61], %104 {strides = array<i32>} : memref<72x128xf32, #tpu.memory_space<vmem>>, vector<8x128xf32>,
    %106 = vector.extract_strided_slice %90 {offsets = [0, 8], sizes = [8, 128], strides = [1, 1]} : vector<8x146xf32> to vector<8x128xf32>
    %c3_62 = arith.constant 3 : index
    %c0_63 = arith.constant 0 : index
    %107 = vector.load %arg2[%c3_62, %c0_63] : memref<9x128xf32, #tpu.memory_space<vmem>>, vector<1x128xf32>
    %108 = vector.broadcast %107 : vector<1x128xf32> to vector<8x128xf32>
    %109 = arith.mulf %106, %108 : vector<8x128xf32>
    %c24_64 = arith.constant 24 : index
    %c0_65 = arith.constant 0 : index
    %110 = vector.load %arg13[%c24_64, %c0_65] : memref<72x128xf32, #tpu.memory_space<vmem>>, vector<8x128xf32>
    tpu.vector_store %arg13[%c24_64, %c0_65], %109 {strides = array<i32>} : memref<72x128xf32, #tpu.memory_space<vmem>>, vector<8x128xf32>,
    %111 = vector.extract_strided_slice %90 {offsets = [0, 9], sizes = [8, 128], strides = [1, 1]} : vector<8x146xf32> to vector<8x128xf32>
    %c4_66 = arith.constant 4 : index
    %c0_67 = arith.constant 0 : index
    %112 = vector.load %arg2[%c4_66, %c0_67] : memref<9x128xf32, #tpu.memory_space<vmem>>, vector<1x128xf32>
    %113 = vector.broadcast %112 : vector<1x128xf32> to vector<8x128xf32>
    %114 = arith.mulf %111, %113 : vector<8x128xf32>
    %c32_68 = arith.constant 32 : index
    %c0_69 = arith.constant 0 : index
    %115 = vector.load %arg13[%c32_68, %c0_69] : memref<72x128xf32, #tpu.memory_space<vmem>>, vector<8x128xf32>
    tpu.vector_store %arg13[%c32_68, %c0_69], %114 {strides = array<i32>} : memref<72x128xf32, #tpu.memory_space<vmem>>, vector<8x128xf32>,
    %116 = vector.extract_strided_slice %90 {offsets = [0, 10], sizes = [8, 128], strides = [1, 1]} : vector<8x146xf32> to vector<8x128xf32>
    %c5_70 = arith.constant 5 : index
    %c0_71 = arith.constant 0 : index
    %117 = vector.load %arg2[%c5_70, %c0_71] : memref<9x128xf32, #tpu.memory_space<vmem>>, vector<1x128xf32>
    %118 = vector.broadcast %117 : vector<1x128xf32> to vector<8x128xf32>
    %119 = arith.mulf %116, %118 : vector<8x128xf32>
    %c40 = arith.constant 40 : index
    %c0_72 = arith.constant 0 : index
    %120 = vector.load %arg13[%c40, %c0_72] : memref<72x128xf32, #tpu.memory_space<vmem>>, vector<8x128xf32>
    tpu.vector_store %arg13[%c40, %c0_72], %119 {strides = array<i32>} : memref<72x128xf32, #tpu.memory_space<vmem>>, vector<8x128xf32>,
    %121 = vector.extract_strided_slice %90 {offsets = [0, 16], sizes = [8, 128], strides = [1, 1]} : vector<8x146xf32> to vector<8x128xf32>
    %c6_73 = arith.constant 6 : index
    %c0_74 = arith.constant 0 : index
    %122 = vector.load %arg2[%c6_73, %c0_74] : memref<9x128xf32, #tpu.memory_space<vmem>>, vector<1x128xf32>
    %123 = vector.broadcast %122 : vector<1x128xf32> to vector<8x128xf32>
    %124 = arith.mulf %121, %123 : vector<8x128xf32>
    %c48 = arith.constant 48 : index
    %c0_75 = arith.constant 0 : index
    %125 = vector.load %arg13[%c48, %c0_75] : memref<72x128xf32, #tpu.memory_space<vmem>>, vector<8x128xf32>
    tpu.vector_store %arg13[%c48, %c0_75], %124 {strides = array<i32>} : memref<72x128xf32, #tpu.memory_space<vmem>>, vector<8x128xf32>,
    %126 = vector.extract_strided_slice %90 {offsets = [0, 17], sizes = [8, 128], strides = [1, 1]} : vector<8x146xf32> to vector<8x128xf32>
    %c7_76 = arith.constant 7 : index
    %c0_77 = arith.constant 0 : index
    %127 = vector.load %arg2[%c7_76, %c0_77] : memref<9x128xf32, #tpu.memory_space<vmem>>, vector<1x128xf32>
    %128 = vector.broadcast %127 : vector<1x128xf32> to vector<8x128xf32>
    %129 = arith.mulf %126, %128 : vector<8x128xf32>
    %c56 = arith.constant 56 : index
    %c0_78 = arith.constant 0 : index
    %130 = vector.load %arg13[%c56, %c0_78] : memref<72x128xf32, #tpu.memory_space<vmem>>, vector<8x128xf32>
    tpu.vector_store %arg13[%c56, %c0_78], %129 {strides = array<i32>} : memref<72x128xf32, #tpu.memory_space<vmem>>, vector<8x128xf32>,
    %131 = vector.extract_strided_slice %90 {offsets = [0, 18], sizes = [8, 128], strides = [1, 1]} : vector<8x146xf32> to vector<8x128xf32>
    %c8_79 = arith.constant 8 : index
    %c0_80 = arith.constant 0 : index
    %132 = vector.load %arg2[%c8_79, %c0_80] : memref<9x128xf32, #tpu.memory_space<vmem>>, vector<1x128xf32>
    %133 = vector.broadcast %132 : vector<1x128xf32> to vector<8x128xf32>
    %134 = arith.mulf %131, %133 : vector<8x128xf32>
    %c64 = arith.constant 64 : index
    %c0_81 = arith.constant 0 : index
    %135 = vector.load %arg13[%c64, %c0_81] : memref<72x128xf32, #tpu.memory_space<vmem>>, vector<8x128xf32>
    tpu.vector_store %arg13[%c64, %c0_81], %134 {strides = array<i32>} : memref<72x128xf32, #tpu.memory_space<vmem>>, vector<8x128xf32>,
    %c0_82 = arith.constant 0 : index
    %c0_83 = arith.constant 0 : index
    %136 = vector.load %arg6[%c0_82, %c0_83] : memref<8x72xbf16, #tpu.memory_space<vmem>>, vector<8x72xbf16>
    %c0_84 = arith.constant 0 : index
    %c0_85 = arith.constant 0 : index
    %137 = vector.load %arg13[%c0_84, %c0_85] : memref<72x128xf32, #tpu.memory_space<vmem>>, vector<72x128xf32>
    %138 = arith.truncf %137 : vector<72x128xf32> to vector<72x128xbf16>
    %cst_86 = arith.constant dense<0.000000e+00> : vector<8x128xf32>
    %139 = tpu.matmul %136, %138, %cst_86 {dimension_numbers = #tpu.dot_dimension_numbers<[1], [0], [0], [1], [0, 0, 1, 1], [], []>} : vector<8x72xbf16>, vector<72x128xbf16>, vector<8x128xf32> -> vector<8x128xf32>
    %cst_87 = arith.constant dense<0.000000e+00> : vector<8xf32>
    %140 = vector.multi_reduction <add>, %139, %cst_87 [1] : vector<8x128xf32> to vector<8xf32>
    %141 = vector.shape_cast %140 : vector<8xf32> to vector<8x1xf32>
    %cst_88 = arith.constant 1.280000e+02 : f32
    %142 = vector.broadcast %cst_88 : f32 to vector<8x1xf32>
    %143 = arith.divf %141, %142 : vector<8x1xf32>
    %144 = vector.broadcast %143 : vector<8x1xf32> to vector<8x128xf32>
    %145 = arith.subf %139, %144 : vector<8x128xf32>
    %146 = arith.mulf %145, %145 : vector<8x128xf32>
    %cst_89 = arith.constant dense<0.000000e+00> : vector<8xf32>
    %147 = vector.multi_reduction <add>, %146, %cst_89 [1] : vector<8x128xf32> to vector<8xf32>
    %148 = vector.shape_cast %147 : vector<8xf32> to vector<8x1xf32>
    %cst_90 = arith.constant 1.280000e+02 : f32
    %149 = vector.broadcast %cst_90 : f32 to vector<8x1xf32>
    %150 = arith.divf %148, %149 : vector<8x1xf32>
    %151 = vector.broadcast %143 : vector<8x1xf32> to vector<8x128xf32>
    %152 = arith.subf %139, %151 : vector<8x128xf32>
    %cst_91 = arith.constant 9.99999974E-6 : f32
    %153 = vector.broadcast %cst_91 : f32 to vector<8x1xf32>
    %154 = arith.addf %150, %153 : vector<8x1xf32>
    %155 = math.rsqrt %154 : vector<8x1xf32>
    %156 = vector.broadcast %155 : vector<8x1xf32> to vector<8x128xf32>
    %157 = arith.mulf %152, %156 : vector<8x128xf32>
    %c0_92 = arith.constant 0 : index
    %c0_93 = arith.constant 0 : index
    %158 = vector.load %arg7[%c0_92, %c0_93] : memref<8x1xf32, #tpu.memory_space<vmem>>, vector<8x1xf32>
    %159 = vector.broadcast %158 : vector<8x1xf32> to vector<8x128xf32>
    %160 = arith.mulf %157, %159 : vector<8x128xf32>
    %c0_94 = arith.constant 0 : index
    %c0_95 = arith.constant 0 : index
    %161 = vector.load %arg8[%c0_94, %c0_95] : memref<8x1xf32, #tpu.memory_space<vmem>>, vector<8x1xf32>
    %162 = vector.broadcast %161 : vector<8x1xf32> to vector<8x128xf32>
    %163 = arith.addf %160, %162 : vector<8x128xf32>
    %cst_96 = arith.constant 0.000000e+00 : f32
    %164 = vector.broadcast %cst_96 : f32 to vector<8x128xf32>
    %165 = arith.maximumf %163, %164 : vector<8x128xf32>
    %c0_97 = arith.constant 0 : index
    %c0_98 = arith.constant 0 : index
    %166 = vector.load %arg9[%c0_97, %c0_98] : memref<8x128xf32, #tpu.memory_space<vmem>>, vector<8x128xf32>
    tpu.vector_store %arg9[%c0_97, %c0_98], %165 {strides = array<i32>} : memref<8x128xf32, #tpu.memory_space<vmem>>, vector<8x128xf32>,
    return
  }
  func.func @transform_0(%arg0: i32) -> (i32, i32) {
    %c0_i32 = arith.constant 0 : i32
    %c0_i32_0 = arith.constant 0 : i32
    %c0_i32_1 = arith.constant 0 : i32
    return %c0_i32, %c0_i32_0 : i32, i32
  }
  func.func @transform_1(%arg0: i32) -> (i32, i32) {
    %c0_i32 = arith.constant 0 : i32
    %c0_i32_0 = arith.constant 0 : i32
    %c0_i32_1 = arith.constant 0 : i32
    return %c0_i32, %c0_i32_0 : i32, i32
  }
  func.func @transform_2(%arg0: i32) -> (i32, i32) {
    %c0_i32 = arith.constant 0 : i32
    %c0_i32_0 = arith.constant 0 : i32
    %c0_i32_1 = arith.constant 0 : i32
    return %c0_i32, %c0_i32_0 : i32, i32
  }
  func.func @transform_3(%arg0: i32) -> (i32, i32) {
    %c0_i32 = arith.constant 0 : i32
    %c0_i32_0 = arith.constant 0 : i32
    %c0_i32_1 = arith.constant 0 : i32
    return %c0_i32, %c0_i32_0 : i32, i32
  }
  func.func @transform_4(%arg0: i32) -> (i32, i32) {
    %c0_i32 = arith.constant 0 : i32
    %c0_i32_0 = arith.constant 0 : i32
    %c0_i32_1 = arith.constant 0 : i32
    return %c0_i32, %c0_i32_0 : i32, i32
  }
  func.func @transform_5(%arg0: i32) -> (i32, i32) {
    %c0_i32 = arith.constant 0 : i32
    %c0_i32_0 = arith.constant 0 : i32
    %c0_i32_1 = arith.constant 0 : i32
    return %c0_i32, %c0_i32_0 : i32, i32
  }
  func.func @transform_6(%arg0: i32) -> (i32, i32) {
    %c0_i32 = arith.constant 0 : i32
    %c0_i32_0 = arith.constant 0 : i32
    %c0_i32_1 = arith.constant 0 : i32
    return %c0_i32, %c0_i32_0 : i32, i32
  }
  func.func @transform_7(%arg0: i32) -> (i32, i32) {
    %c0_i32 = arith.constant 0 : i32
    %c0_i32_0 = arith.constant 0 : i32
    %c0_i32_1 = arith.constant 0 : i32
    return %c0_i32, %c0_i32_0 : i32, i32
  }
  func.func @transform_8(%arg0: i32) -> (i32, i32) {
    %c0_i32 = arith.constant 0 : i32
    %c0_i32_0 = arith.constant 0 : i32
    %c0_i32_1 = arith.constant 0 : i32
    return %c0_i32, %c0_i32_0 : i32, i32
  }
}

</mosaic_0001>

<llo_original>
// kernel: down_block_pallas.1
$region0: #{down_block_pallas.1}
  #allocation0 [shape = 'u32[]', space=smem, size = 0x4, offset = 0x4, fixed_abs, tag = 'smem constant byte address 0x4 - core index']
  #allocation1 [shape = 'u32[144,128]{1,0:T(1,128)}', space=vmem, size = 0x12000, scoped, tag = 'internal scratch']
  #allocation2 [shape = 'f32[4,146]{1,0:T(4,128)}', space=vmem, size = 0x1000, scoped, tag = 'scratch operand']
  #allocation3 [shape = 'f32[36,128]{1,0:T(8,128)}', space=vmem, size = 0x5000, scoped, tag = 'scratch operand']
  #allocation4 [shape = 'f32[8,146]{1,0:T(8,128)}', space=vmem, size = 0x2000, scoped, tag = 'scratch operand']
  #allocation5 [shape = 'f32[72,128]{1,0:T(8,128)}', space=vmem, size = 0x9000, scoped, tag = 'scratch operand']
  %s0 = inlined_call_operand.vmem [shape: f32[16,128], index: 0, kind: input, shape index: {}]
  %s1 = inlined_call_operand.vmem [shape: f32[9,128], index: 1, kind: input, shape index: {}]
  %s2 = inlined_call_operand.vmem [shape: bf16[8,36], index: 2, kind: input, shape index: {}]
  %s3 = inlined_call_operand.vmem [shape: f32[8,1], index: 3, kind: input, shape index: {}]
  %s4 = inlined_call_operand.vmem [shape: f32[8,1], index: 4, kind: input, shape index: {}]
  %s5 = inlined_call_operand.vmem [shape: bf16[8,72], index: 5, kind: input, shape index: {}]
  %s6 = inlined_call_operand.vmem [shape: f32[8,1], index: 6, kind: input, shape index: {}]
  %s7 = inlined_call_operand.vmem [shape: f32[8,1], index: 7, kind: input, shape index: {}]
  %s8 = inlined_call_operand.vmem [shape: f32[8,128], index: 8, kind: output, shape index: {}]
  %s9 = sld [smem:[#allocation0]]
  $region42: #{down_block_pallas.1} parent=0
    _
  %s11 = ssub.s32 1, %s9
  %s12 = scalar_select 0, %s11, %s9
  // Predicated region
  $region2: #{down_block_pallas.1} parent=0 // pred_check
    _
  $region3: #{down_block_pallas.1} parent=0 // pred_check_branch
    %14 = sbr.rel (0) target = $region5
  $region4: #{down_block_pallas.1} parent=0 // pred_region
    _
  $region5: #{down_block_pallas.1} parent=0 // pred_fallthru
    _
  // Predicated region
  $region6: #{down_block_pallas.1} parent=0 // pred_check
    _
  $region7: #{down_block_pallas.1} parent=0 // pred_check_branch
    %16 = sbr.rel (0) target = $region9
  $region8: #{down_block_pallas.1} parent=0 // pred_region
    _
  $region9: #{down_block_pallas.1} parent=0 // pred_fallthru
    _
  // Predicated region
  $region10: #{down_block_pallas.1} parent=0 // pred_check
    _
  $region11: #{down_block_pallas.1} parent=0 // pred_check_branch
    %18 = sbr.rel (0) target = $region13
  $region12: #{down_block_pallas.1} parent=0 // pred_region
    _
  $region13: #{down_block_pallas.1} parent=0 // pred_fallthru
    _
  // Predicated region
  $region14: #{down_block_pallas.1} parent=0 // pred_check
    _
  $region15: #{down_block_pallas.1} parent=0 // pred_check_branch
    %20 = sbr.rel (0) target = $region17
  $region16: #{down_block_pallas.1} parent=0 // pred_region
    _
  $region17: #{down_block_pallas.1} parent=0 // pred_fallthru
    _
  // Predicated region
  $region18: #{down_block_pallas.1} parent=0 // pred_check
    _
  $region19: #{down_block_pallas.1} parent=0 // pred_check_branch
    %22 = sbr.rel (0) target = $region21
  $region20: #{down_block_pallas.1} parent=0 // pred_region
    _
  $region21: #{down_block_pallas.1} parent=0 // pred_fallthru
    _
  // Predicated region
  $region22: #{down_block_pallas.1} parent=0 // pred_check
    _
  $region23: #{down_block_pallas.1} parent=0 // pred_check_branch
    %24 = sbr.rel (0) target = $region25
  $region24: #{down_block_pallas.1} parent=0 // pred_region
    _
  $region25: #{down_block_pallas.1} parent=0 // pred_fallthru
    _
  // Predicated region
  $region26: #{down_block_pallas.1} parent=0 // pred_check
    _
  $region27: #{down_block_pallas.1} parent=0 // pred_check_branch
    %26 = sbr.rel (0) target = $region29
  $region28: #{down_block_pallas.1} parent=0 // pred_region
    _
  $region29: #{down_block_pallas.1} parent=0 // pred_fallthru
    _
  // Predicated region
  $region30: #{down_block_pallas.1} parent=0 // pred_check
    _
  $region31: #{down_block_pallas.1} parent=0 // pred_check_branch
    %28 = sbr.rel (0) target = $region33
  $region32: #{down_block_pallas.1} parent=0 // pred_region
    _
  $region33: #{down_block_pallas.1} parent=0 // pred_fallthru
    _
  %v30 = vld [vmem:[%s0] sm:$0xff]
  %v31 = vld [vmem:[%s0 + $0x8] sm:$0xff]
  %v33 = vrot.slane %v30, 4
  %v35 = vmax.f32 %v30, %v33
  %v37 = vrot.slane %v31, 4
  %v39 = vmax.f32 %v31, %v37
  %v40 = vmax.f32 %v35, %v39
  %vm41 = vcmask 1043456
  %vm42 = vcmask 146436
  %vm43 = vmor %vm42, %vm41
  %44 = vst.msk [vmem:[#allocation2] sm:$0xff] %vm43, 0.0
  %46 = vrot.lane.b32.xlu0 %v40, 9
  %v47 = vpop.permute.xlu0 %46
  %v48 = vrot.slane %v47, 4
  %vm49 = vcmask 72704
  %v50 = vsel %vm49, %v48, %v47
  %vm52 = vcmask 1043528
  %vm53 = vcmask 72708
  %vm54 = vmor %vm53, %vm52
  %55 = vst.msk [vmem:[#allocation2] sm:$0xff] %vm54, %v50
  %v56 = vld [vmem:[#allocation2] sm:$0xff]
  %v57 = vld [vmem:[%s1] sm:$0x1]
  %v58 = vlaneseq
  %v59 = vshrl.u32 %v58, 7
  %v60 = vsub.s32 0, %v59
  %v61 = vrot.slane %v57, %v60
  %v62 = vmul.f32 %v56, %v61
  %63 = vst [vmem:[#allocation3] sm:$0xf] %v62
  %v64 = vld [vmem:[%s1 + $0x1] sm:$0x1]
  %v65 = vlaneseq
  %v66 = vshrl.u32 %v65, 7
  %v67 = vsub.s32 0, %v66
  %v68 = vrot.slane %v64, %v67
  %70 = vrot.lane.b32.xlu0 %v68, 1
  %v71 = vpop.permute.xlu0 %70
  %v72 = vrot.slane %v71, 4
  %vm73 = vcmask 7168
  %v74 = vsel %vm73, %v72, %v71
  %v76 = vmul.f32 %v56, %v74
  %v78 = vcombine.high %v76, %v76
  %79 = vrot.lane.b32.xlu0 %v76, 127
  %v80 = vpop.permute.xlu0 %79
  %81 = vrot.lane.b32.xlu0 %v78, 127
  %v82 = vpop.permute.xlu0 %81
  %vm83 = vcmask 1039360
  %v84 = vsel %vm83, %v80, %v82
  %86 = vst [vmem:[#allocation3 + $0x4] sm:$0xf] %v84
  %v87 = vld [vmem:[%s1 + $0x2] sm:$0x1]
  %v88 = vlaneseq
  %v89 = vshrl.u32 %v88, 7
  %v90 = vsub.s32 0, %v89
  %v91 = vrot.slane %v87, %v90
  %93 = vrot.lane.b32.xlu0 %v91, 2
  %v94 = vpop.permute.xlu0 %93
  %v95 = vrot.slane %v94, 4
  %vm96 = vcmask 15360
  %v97 = vsel %vm96, %v95, %v94
  %v99 = vmul.f32 %v56, %v97
  %v101 = vcombine.high %v99, %v99
  %102 = vrot.lane.b32.xlu0 %v99, 126
  %v103 = vpop.permute.xlu0 %102
  %104 = vrot.lane.b32.xlu0 %v101, 126
  %v105 = vpop.permute.xlu0 %104
  %vm106 = vcmask 1031168
  %v107 = vsel %vm106, %v103, %v105
  %109 = vst [vmem:[#allocation3 + $0x8] sm:$0xf] %v107
  %v110 = vld [vmem:[%s1 + $0x3] sm:$0x1]
  %v111 = vlaneseq
  %v112 = vshrl.u32 %v111, 7
  %v113 = vsub.s32 0, %v112
  %v114 = vrot.slane %v110, %v113
  %116 = vrot.lane.b32.xlu0 %v114, 8
  %v117 = vpop.permute.xlu0 %116
  %v118 = vrot.slane %v117, 4
  %vm119 = vcmask 64512
  %v120 = vsel %vm119, %v118, %v117
  %v122 = vmul.f32 %v56, %v120
  %v124 = vcombine.high %v122, %v122
  %125 = vrot.lane.b32.xlu0 %v122, 120
  %v126 = vpop.permute.xlu0 %125
  %127 = vrot.lane.b32.xlu0 %v124, 120
  %v128 = vpop.permute.xlu0 %127
  %vm129 = vcmask 982016
  %v130 = vsel %vm129, %v126, %v128
  %132 = vst [vmem:[#allocation3 + $0xc] sm:$0xf] %v130
  %v133 = vld [vmem:[%s1 + $0x4] sm:$0x1]
  %v134 = vlaneseq
  %v135 = vshrl.u32 %v134, 7
  %v136 = vsub.s32 0, %v135
  %v137 = vrot.slane %v133, %v136
  %139 = vrot.lane.b32.xlu0 %v137, 9
  %v140 = vpop.permute.xlu0 %139
  %v141 = vrot.slane %v140, 4
  %v142 = vsel %vm49, %v141, %v140
  %v144 = vmul.f32 %v56, %v142
  %v146 = vcombine.high %v144, %v144
  %147 = vrot.lane.b32.xlu0 %v144, 119
  %v148 = vpop.permute.xlu0 %147
  %149 = vrot.lane.b32.xlu0 %v146, 119
  %v150 = vpop.permute.xlu0 %149
  %vm151 = vcmask 973824
  %v152 = vsel %vm151, %v148, %v150
  %154 = vst [vmem:[#allocation3 + $0x10] sm:$0xf] %v152
  %v155 = vld [vmem:[%s1 + $0x5] sm:$0x1]
  %v156 = vlaneseq
  %v157 = vshrl.u32 %v156, 7
  %v158 = vsub.s32 0, %v157
  %v159 = vrot.slane %v155, %v158
  %161 = vrot.lane.b32.xlu0 %v159, 10
  %v162 = vpop.permute.xlu0 %161
  %v163 = vrot.slane %v162, 4
  %vm164 = vcmask 80896
  %v165 = vsel %vm164, %v163, %v162
  %v167 = vmul.f32 %v56, %v165
  %v169 = vcombine.high %v167, %v167
  %170 = vrot.lane.b32.xlu0 %v167, 118
  %v171 = vpop.permute.xlu0 %170
  %172 = vrot.lane.b32.xlu0 %v169, 118
  %v173 = vpop.permute.xlu0 %172
  %vm174 = vcmask 965632
  %v175 = vsel %vm174, %v171, %v173
  %177 = vst [vmem:[#allocation3 + $0x14] sm:$0xf] %v175
  %v178 = vld [vmem:[%s1 + $0x6] sm:$0x1]
  %v179 = vlaneseq
  %v180 = vshrl.u32 %v179, 7
  %v181 = vsub.s32 0, %v180
  %v182 = vrot.slane %v178, %v181
  %184 = vrot.lane.b32.xlu0 %v182, 16
  %v185 = vpop.permute.xlu0 %184
  %v186 = vrot.slane %v185, 4
  %vm187 = vcmask 130048
  %v188 = vsel %vm187, %v186, %v185
  %v190 = vmul.f32 %v56, %v188
  %v192 = vcombine.high %v190, %v190
  %193 = vrot.lane.b32.xlu0 %v190, 112
  %v194 = vpop.permute.xlu0 %193
  %195 = vrot.lane.b32.xlu0 %v192, 112
  %v196 = vpop.permute.xlu0 %195
  %vm197 = vcmask 916480
  %v198 = vsel %vm197, %v194, %v196
  %200 = vst [vmem:[#allocation3 + $0x18] sm:$0xf] %v198
  %v201 = vld [vmem:[%s1 + $0x7] sm:$0x1]
  %v202 = vlaneseq
  %v203 = vshrl.u32 %v202, 7
  %v204 = vsub.s32 0, %v203
  %v205 = vrot.slane %v201, %v204
  %207 = vrot.lane.b32.xlu0 %v205, 17
  %v208 = vpop.permute.xlu0 %207
  %v209 = vrot.slane %v208, 4
  %vm210 = vcmask 138240
  %v211 = vsel %vm210, %v209, %v208
  %v213 = vmul.f32 %v56, %v211
  %v215 = vcombine.high %v213, %v213
  %216 = vrot.lane.b32.xlu0 %v213, 111
  %v217 = vpop.permute.xlu0 %216
  %218 = vrot.lane.b32.xlu0 %v215, 111
  %v219 = vpop.permute.xlu0 %218
  %vm220 = vcmask 908288
  %v221 = vsel %vm220, %v217, %v219
  %223 = vst [vmem:[#allocation3 + $0x1c] sm:$0xf] %v221
  %v224 = vld [vmem:[%s1 + $0x8] sm:$0x1]
  %v225 = vlaneseq
  %v226 = vshrl.u32 %v225, 7
  %v227 = vsub.s32 0, %v226
  %v228 = vrot.slane %v224, %v227
  %230 = vrot.lane.b32.xlu0 %v228, 18
  %v231 = vpop.permute.xlu0 %230
  %v232 = vrot.slane %v231, 4
  %vm233 = vcmask 146432
  %v234 = vsel %vm233, %v232, %v231
  %v236 = vmul.f32 %v56, %v234
  %v238 = vcombine.high %v236, %v236
  %239 = vrot.lane.b32.xlu0 %v236, 110
  %v240 = vpop.permute.xlu0 %239
  %241 = vrot.lane.b32.xlu0 %v238, 110
  %v242 = vpop.permute.xlu0 %241
  %vm243 = vcmask 900096
  %v244 = vsel %vm243, %v240, %v242
  %246 = vst [vmem:[#allocation3 + $0x20] sm:$0xf] %v244
  %v247 = vld [vmem:[%s2] sm:$0xf]
  %v248 = vld [vmem:[#allocation3] sm:$0xff]
  %v249 = vld [vmem:[#allocation3 + $0x8] sm:$0xff]
  %v250 = vld [vmem:[#allocation3 + $0x10] sm:$0xff]
  %v251 = vld [vmem:[#allocation3 + $0x18] sm:$0xff]
  %v252 = vld [vmem:[#allocation3 + $0x20] sm:$0xf]
  %v253 = vpack.c.bf16 %v249, %v248
  %v254 = vpack.c.bf16 %v251, %v250
  %v255 = vpack.c.bf16 %v252, %v252
  %vm256 = vcmask 293888
  %v258 = vsel %vm256, %v247, 0
  %vm260 = vcmask 1041408
  %v262 = vsel %vm260, %v255, 0
  %264 = vmatprep.subr.bf16.mxu0 0
  %265 = vmatpush1.bf16.msra.mxu0 %v253
  %266 = vmatprep.subr.bf16.mxu0 0
  %267 = vmatpush1.bf16.msra.mxu0 %v254
  %268 = vmatprep.subr.bf16.mxu0 0
  %269 = vmatpush1.bf16.msra.mxu0 %v262
  %270 = vmatprep.subr.bf16.mxu0 0
  %271 = vmatpush1.bf16.msra.mxu0 0
  %272 = vmatprep.subr.bf16.mxu0 0
  %273 = vmatpush1.bf16.msra.mxu0 0
  %274 = vmatprep.subr.bf16.mxu0 0
  %275 = vmatpush1.bf16.msra.mxu0 0
  %276 = vmatprep.subr.bf16.mxu0 0
  %277 = vmatpush1.bf16.msra.mxu0 0
  %278 = vmatprep.subr.bf16.mxu0 0
  %279 = vmatpush1.bf16.msra.mxu0 0
  %280 = vmatprep.subr.bf16.mxu0 0
  %281 = vmatpush1.bf16.msra.mxu0 0
  %282 = vmatprep.subr.bf16.mxu0 0
  %283 = vmatpush1.bf16.msra.mxu0 0
  %284 = vmatprep.subr.bf16.mxu0 0
  %285 = vmatpush1.bf16.msra.mxu0 0
  %286 = vmatprep.subr.bf16.mxu0 0
  %287 = vmatpush1.bf16.msra.mxu0 0
  %288 = vmatprep.subr.bf16.mxu0 0
  %289 = vmatpush1.bf16.msra.mxu0 0
  %290 = vmatprep.subr.bf16.mxu0 0
  %291 = vmatpush1.bf16.msra.mxu0 0
  %292 = vmatprep.subr.bf16.mxu0 0
  %293 = vmatpush1.bf16.msra.mxu0 0
  %294 = vmatprep.subr.bf16.mxu0 0
  %295 = vmatpush1.bf16.msra.mxu0 0
  %296 = vmatprep.mubr.bf16.mxu0 0
  %297 = vmatmul.mubr.bf16.gmra.mrb[0].mxu0 %v258
  %v298 = vpop.f32.mrb[0].mxu0
  %v299 = vadd.f32 0.0, %v298
  %v300 = vpop.f32.mrb[0].mxu0
  %v301 = vpop.f32.mrb[0].mxu0
  %v302 = vpop.f32.mrb[0].mxu0
  %303 = vdwg.mxu0
  %304 = vadd.xlane.f32.xlu0 %v299
  %v305 = vpop.xlane.xlu0 %304
  %v306 = vrcp.pop 128.0
  %v307 = vmul.f32 %v305, %v306
  %v308 = vsub.f32 %v299, %v307
  %v309 = vmul.f32 %v308, %v308
  %310 = vadd.xlane.f32.xlu0 %v309
  %v311 = vpop.xlane.xlu0 %310
  %v312 = vmul.f32 %v311, %v306
  %v313 = vadd.f32 %v312, 1e-05
  %v314 = vrsqrt.pop %v313
  %v315 = vmul.f32 %v308, %v314
  %v316 = vld [vmem:[%s3] sm:$0xff]
  %318 = vset.pattern.permute.xlu0 0
  %319 = vperm.xlu0 %318, %v316
  %v320 = vpop.permute.xlu0 %319
  %v322 = vmul.f32 %v315, %v320
  %v323 = vld [vmem:[%s4] sm:$0xff]
  %325 = vset.pattern.permute.xlu0 0
  %326 = vperm.xlu0 %325, %v323
  %v327 = vpop.permute.xlu0 %326
  %v329 = vadd.f32 %v322, %v327
  %v330 = vmax.f32 %v329, 0.0
  %331 = vst [vmem:[#allocation4] sm:$0xff] 0.0
  %332 = vst.msk [vmem:[#allocation4 + $0x8] sm:$0xff] %vm233, 0.0
  %334 = vrot.lane.b32.xlu0 %v330, 9
  %v335 = vpop.permute.xlu0 %334
  %vm337 = vcmask 1047624
  %338 = vst.msk [vmem:[#allocation4] sm:$0xff] %vm337, %v335
  %339 = vst.msk [vmem:[#allocation4 + $0x8] sm:$0xff] %vm49, %v335
  %v340 = vld [vmem:[#allocation4] sm:$0xff]
  %v341 = vld [vmem:[#allocation4 + $0x8] sm:$0xff]
  %v342 = vld [vmem:[%s1] sm:$0x1]
  %v343 = vlaneseq
  %v344 = vshrl.u32 %v343, 7
  %v345 = vsub.s32 0, %v344
  %v346 = vrot.slane %v342, %v345
  %v347 = vmul.f32 %v340, %v346
  %348 = vst [vmem:[#allocation5] sm:$0xff] %v347
  %v349 = vld [vmem:[%s1 + $0x1] sm:$0x1]
  %v350 = vlaneseq
  %v351 = vshrl.u32 %v350, 7
  %v352 = vsub.s32 0, %v351
  %v353 = vrot.slane %v349, %v352
  %355 = vrot.lane.b32.xlu0 %v353, 1
  %v356 = vpop.permute.xlu0 %355
  %v358 = vmul.f32 %v340, %v356
  %v359 = vmul.f32 %v341, %v356
  %362 = vrot.lane.b32.xlu0 %v358, 127
  %v363 = vpop.permute.xlu0 %362
  %364 = vrot.lane.b32.xlu0 %v359, 127
  %v365 = vpop.permute.xlu0 %364
  %v366 = vsel %vm83, %v363, %v365
  %368 = vst [vmem:[#allocation5 + $0x8] sm:$0xff] %v366
  %v369 = vld [vmem:[%s1 + $0x2] sm:$0x1]
  %v370 = vlaneseq
  %v371 = vshrl.u32 %v370, 7
  %v372 = vsub.s32 0, %v371
  %v373 = vrot.slane %v369, %v372
  %375 = vrot.lane.b32.xlu0 %v373, 2
  %v376 = vpop.permute.xlu0 %375
  %v378 = vmul.f32 %v340, %v376
  %v379 = vmul.f32 %v341, %v376
  %382 = vrot.lane.b32.xlu0 %v378, 126
  %v383 = vpop.permute.xlu0 %382
  %384 = vrot.lane.b32.xlu0 %v379, 126
  %v385 = vpop.permute.xlu0 %384
  %v386 = vsel %vm106, %v383, %v385
  %388 = vst [vmem:[#allocation5 + $0x10] sm:$0xff] %v386
  %v389 = vld [vmem:[%s1 + $0x3] sm:$0x1]
  %v390 = vlaneseq
  %v391 = vshrl.u32 %v390, 7
  %v392 = vsub.s32 0, %v391
  %v393 = vrot.slane %v389, %v392
  %395 = vrot.lane.b32.xlu0 %v393, 8
  %v396 = vpop.permute.xlu0 %395
  %v398 = vmul.f32 %v340, %v396
  %v399 = vmul.f32 %v341, %v396
  %402 = vrot.lane.b32.xlu0 %v398, 120
  %v403 = vpop.permute.xlu0 %402
  %404 = vrot.lane.b32.xlu0 %v399, 120
  %v405 = vpop.permute.xlu0 %404
  %v406 = vsel %vm129, %v403, %v405
  %408 = vst [vmem:[#allocation5 + $0x18] sm:$0xff] %v406
  %v409 = vld [vmem:[%s1 + $0x4] sm:$0x1]
  %v410 = vlaneseq
  %v411 = vshrl.u32 %v410, 7
  %v412 = vsub.s32 0, %v411
  %v413 = vrot.slane %v409, %v412
  %415 = vrot.lane.b32.xlu0 %v413, 9
  %v416 = vpop.permute.xlu0 %415
  %v418 = vmul.f32 %v340, %v416
  %v419 = vmul.f32 %v341, %v416
  %422 = vrot.lane.b32.xlu0 %v418, 119
  %v423 = vpop.permute.xlu0 %422
  %424 = vrot.lane.b32.xlu0 %v419, 119
  %v425 = vpop.permute.xlu0 %424
  %v426 = vsel %vm151, %v423, %v425
  %428 = vst [vmem:[#allocation5 + $0x20] sm:$0xff] %v426
  %v429 = vld [vmem:[%s1 + $0x5] sm:$0x1]
  %v430 = vlaneseq
  %v431 = vshrl.u32 %v430, 7
  %v432 = vsub.s32 0, %v431
  %v433 = vrot.slane %v429, %v432
  %435 = vrot.lane.b32.xlu0 %v433, 10
  %v436 = vpop.permute.xlu0 %435
  %v438 = vmul.f32 %v340, %v436
  %v439 = vmul.f32 %v341, %v436
  %442 = vrot.lane.b32.xlu0 %v438, 118
  %v443 = vpop.permute.xlu0 %442
  %444 = vrot.lane.b32.xlu0 %v439, 118
  %v445 = vpop.permute.xlu0 %444
  %v446 = vsel %vm174, %v443, %v445
  %448 = vst [vmem:[#allocation5 + $0x28] sm:$0xff] %v446
  %v449 = vld [vmem:[%s1 + $0x6] sm:$0x1]
  %v450 = vlaneseq
  %v451 = vshrl.u32 %v450, 7
  %v452 = vsub.s32 0, %v451
  %v453 = vrot.slane %v449, %v452
  %455 = vrot.lane.b32.xlu0 %v453, 16
  %v456 = vpop.permute.xlu0 %455
  %v458 = vmul.f32 %v340, %v456
  %v459 = vmul.f32 %v341, %v456
  %462 = vrot.lane.b32.xlu0 %v458, 112
  %v463 = vpop.permute.xlu0 %462
  %464 = vrot.lane.b32.xlu0 %v459, 112
  %v465 = vpop.permute.xlu0 %464
  %v466 = vsel %vm197, %v463, %v465
  %468 = vst [vmem:[#allocation5 + $0x30] sm:$0xff] %v466
  %v469 = vld [vmem:[%s1 + $0x7] sm:$0x1]
  %v470 = vlaneseq
  %v471 = vshrl.u32 %v470, 7
  %v472 = vsub.s32 0, %v471
  %v473 = vrot.slane %v469, %v472
  %475 = vrot.lane.b32.xlu0 %v473, 17
  %v476 = vpop.permute.xlu0 %475
  %v478 = vmul.f32 %v340, %v476
  %v479 = vmul.f32 %v341, %v476
  %482 = vrot.lane.b32.xlu0 %v478, 111
  %v483 = vpop.permute.xlu0 %482
  %484 = vrot.lane.b32.xlu0 %v479, 111
  %v485 = vpop.permute.xlu0 %484
  %v486 = vsel %vm220, %v483, %v485
  %488 = vst [vmem:[#allocation5 + $0x38] sm:$0xff] %v486
  %v489 = vld [vmem:[%s1 + $0x8] sm:$0x1]
  %v490 = vlaneseq
  %v491 = vshrl.u32 %v490, 7
  %v492 = vsub.s32 0, %v491
  %v493 = vrot.slane %v489, %v492
  %495 = vrot.lane.b32.xlu0 %v493, 18
  %v496 = vpop.permute.xlu0 %495
  %v498 = vmul.f32 %v340, %v496
  %v499 = vmul.f32 %v341, %v496
  %502 = vrot.lane.b32.xlu0 %v498, 110
  %v503 = vpop.permute.xlu0 %502
  %504 = vrot.lane.b32.xlu0 %v499, 110
  %v505 = vpop.permute.xlu0 %504
  %v506 = vsel %vm243, %v503, %v505
  %508 = vst [vmem:[#allocation5 + $0x40] sm:$0xff] %v506
  %v509 = vld [vmem:[%s5] sm:$0xf]
  %v510 = vld [vmem:[#allocation5] sm:$0xff]
  %v511 = vld [vmem:[#allocation5 + $0x8] sm:$0xff]
  %v512 = vld [vmem:[#allocation5 + $0x10] sm:$0xff]
  %v513 = vld [vmem:[#allocation5 + $0x18] sm:$0xff]
  %v514 = vld [vmem:[#allocation5 + $0x20] sm:$0xff]
  %v515 = vld [vmem:[#allocation5 + $0x28] sm:$0xff]
  %v516 = vld [vmem:[#allocation5 + $0x30] sm:$0xff]
  %v517 = vld [vmem:[#allocation5 + $0x38] sm:$0xff]
  %v518 = vld [vmem:[#allocation5 + $0x40] sm:$0xff]
  %v519 = vpack.c.bf16 %v511, %v510
  %v520 = vpack.c.bf16 %v513, %v512
  %v521 = vpack.c.bf16 %v515, %v514
  %v522 = vpack.c.bf16 %v517, %v516
  %v523 = vpack.c.bf16 %v518, %v518
  %vm524 = vcmask 588800
  %v526 = vsel %vm524, %v509, 0
  %v529 = vsel %vm41, %v523, 0
  %531 = vmatprep.subr.bf16.mxu0 0
  %532 = vmatpush1.bf16.msra.mxu0 %v519
  %533 = vmatprep.subr.bf16.mxu0 0
  %534 = vmatpush1.bf16.msra.mxu0 %v520
  %535 = vmatprep.subr.bf16.mxu0 0
  %536 = vmatpush1.bf16.msra.mxu0 %v521
  %537 = vmatprep.subr.bf16.mxu0 0
  %538 = vmatpush1.bf16.msra.mxu0 %v522
  %539 = vmatprep.subr.bf16.mxu0 0
  %540 = vmatpush1.bf16.msra.mxu0 %v529
  %541 = vmatprep.subr.bf16.mxu0 0
  %542 = vmatpush1.bf16.msra.mxu0 0
  %543 = vmatprep.subr.bf16.mxu0 0
  %544 = vmatpush1.bf16.msra.mxu0 0
  %545 = vmatprep.subr.bf16.mxu0 0
  %546 = vmatpush1.bf16.msra.mxu0 0
  %547 = vmatprep.subr.bf16.mxu0 0
  %548 = vmatpush1.bf16.msra.mxu0 0
  %549 = vmatprep.subr.bf16.mxu0 0
  %550 = vmatpush1.bf16.msra.mxu0 0
  %551 = vmatprep.subr.bf16.mxu0 0
  %552 = vmatpush1.bf16.msra.mxu0 0
  %553 = vmatprep.subr.bf16.mxu0 0
  %554 = vmatpush1.bf16.msra.mxu0 0
  %555 = vmatprep.subr.bf16.mxu0 0
  %556 = vmatpush1.bf16.msra.mxu0 0
  %557 = vmatprep.subr.bf16.mxu0 0
  %558 = vmatpush1.bf16.msra.mxu0 0
  %559 = vmatprep.subr.bf16.mxu0 0
  %560 = vmatpush1.bf16.msra.mxu0 0
  %561 = vmatprep.subr.bf16.mxu0 0
  %562 = vmatpush1.bf16.msra.mxu0 0
  %563 = vmatprep.mubr.bf16.mxu0 0
  %564 = vmatmul.mubr.bf16.gmra.mrb[0].mxu0 %v526
  %v565 = vpop.f32.mrb[0].mxu0
  %v566 = vadd.f32 0.0, %v565
  %v567 = vpop.f32.mrb[0].mxu0
  %v568 = vpop.f32.mrb[0].mxu0
  %v569 = vpop.f32.mrb[0].mxu0
  %570 = vdwg.mxu0
  %571 = vadd.xlane.f32.xlu0 %v566
  %v572 = vpop.xlane.xlu0 %571
  %v573 = vmul.f32 %v572, %v306
  %v574 = vsub.f32 %v566, %v573
  %v575 = vmul.f32 %v574, %v574
  %576 = vadd.xlane.f32.xlu0 %v575
  %v577 = vpop.xlane.xlu0 %576
  %v578 = vmul.f32 %v577, %v306
  %v579 = vadd.f32 %v578, 1e-05
  %v580 = vrsqrt.pop %v579
  %v581 = vmul.f32 %v574, %v580
  %v582 = vld [vmem:[%s6] sm:$0xff]
  %584 = vset.pattern.permute.xlu0 0
  %585 = vperm.xlu0 %584, %v582
  %v586 = vpop.permute.xlu0 %585
  %v588 = vmul.f32 %v581, %v586
  %v589 = vld [vmem:[%s7] sm:$0xff]
  %591 = vset.pattern.permute.xlu0 0
  %592 = vperm.xlu0 %591, %v589
  %v593 = vpop.permute.xlu0 %592
  %v595 = vadd.f32 %v588, %v593
  %v596 = vmax.f32 %v595, 0.0
  %597 = vst [vmem:[%s8] sm:$0xff] %v596
  // Predicated region
  $region34: #{down_block_pallas.1} parent=0 // pred_check
    _
  $region35: #{down_block_pallas.1} parent=0 // pred_check_branch
    %599 = sbr.rel (0) target = $region37
  $region36: #{down_block_pallas.1} parent=0 // pred_region
    _
  $region37: #{down_block_pallas.1} parent=0 // pred_fallthru
    _
  // Predicated region
  $region38: #{down_block_pallas.1} parent=0 // pred_check
    _
  $region39: #{down_block_pallas.1} parent=0 // pred_check_branch
    %601 = sbr.rel (0) target = $region41
  $region40: #{down_block_pallas.1} parent=0 // pred_region
    _
  $region41: #{down_block_pallas.1} parent=0 // pred_fallthru
    _

</llo_original>
